<compile_context>
chip_gen: v6e
topology: v6e:2x2x1
jax: 0.10.0
libtpu: 0.0.40
codegen_flags: <defaults>
</compile_context>

<pallas_src>
import functools

import jax
import jax.numpy as jnp
from jax.experimental import pallas as pl
from jax.experimental.pallas import tpu as pltpu


def _linear_kernel(x_ref, w_ref, b_ref, o_ref):
    # x_ref: (tm, D) row tile, w_ref: (D, tn) vocab tile, b_ref: (1, tn).
    acc = jnp.dot(x_ref[...], w_ref[...], preferred_element_type=jnp.float32)
    o_ref[...] = (acc + b_ref[...].astype(jnp.float32)).astype(o_ref.dtype)


def _round_up(a, b):
    return (a + b - 1) // b * b


def _vmem_capacity_bytes():
    try:
        return int(pltpu.get_tpu_info().vmem_capacity_bytes)
    except Exception:
        return 64 << 20  # conservative (v7x per-core) fallback


@functools.partial(jax.jit, static_argnames=("tm", "tn"))
def exab_generation_head(hidden_states, weight, bias, *, tm=None, tn=None):
    """hidden_states: (B, S, D); weight: (D, V); bias: (V,). Returns (B, S, V).

    For the bf16 bandwidth / MXU win, cast `weight` (and optionally
    `hidden_states`) to bf16 ONCE at parameter-load time and pass them in
    directly; the kernel accumulates in f32 regardless.
    """
    B, S, D = hidden_states.shape
    Dw, V = weight.shape
    assert D == Dw, (D, Dw)
    M = B * S
    out_dtype = hidden_states.dtype

    x2d = hidden_states.reshape(M, D)
    b2d = bias.reshape(1, V)

    x_item = x2d.dtype.itemsize
    w_item = weight.dtype.itemsize
    o_item = jnp.dtype(out_dtype).itemsize
    b_item = bias.dtype.itemsize
    bias_bytes = V * b_item

    # ---- generation-aware VMEM budget -----------------------------------
    vmem_cap = _vmem_capacity_bytes()
    vmem_budget = int(vmem_cap * 0.80)  # headroom for Mosaic scratch / sems

    # ---- tile selection ---------------------------------------------------
    # M tile: 256 (MXU-friendly) unless M is small; always a multiple of 8.
    tm_eff = tm if tm is not None else 256
    tm_eff = min(tm_eff, _round_up(M, 8))
    # Shrink tm if the double-buffered x tile alone would eat >1/2 the budget.
    max_tm = max(8, ((vmem_budget // 2) // max(1, 2 * D * x_item)) // 8 * 8)
    tm_eff = max(8, min(tm_eff, max_tm))

    if tn is not None:
        tn_eff = min(tn, _round_up(V, 128))
    else:
        # Widest tn (multiple of 256) that fits: double-buffered x/w/bias
        # input tiles plus the double-buffered output tile.
        avail = vmem_budget - 2 * tm_eff * D * x_item - bias_bytes - (4 << 20)
        per_tn = 2 * D * w_item + 2 * tm_eff * o_item + 2 * b_item
        tn_max = max(128, avail // per_tn)
        tn_eff = (tn_max // 256) * 256 if tn_max >= 256 else 128
    if V <= tn_eff:
        tn_eff = V  # single full-width block (full-dim blocks are always legal)

    nm = pl.cdiv(M, tm_eff)
    nv = pl.cdiv(V, tn_eff)

    x_bytes = M * D * x_item
    w_bytes = D * V * w_item
    out_bytes = M * V * o_item

    # Grid ordering: stream the operand whose total re-read traffic is lower.
    #   V innermost -> weight re-read nm times, x read once.
    #   M innermost -> x re-read nv times, weight read once.
    v_inner = (nm - 1) * w_bytes <= (nv - 1) * x_bytes

    if v_inner:
        grid = (nm, nv)
        x_spec = pl.BlockSpec((tm_eff, D), lambda i, j: (i, 0))
        w_spec = pl.BlockSpec((D, tn_eff), lambda i, j: (0, j))
        b_spec = pl.BlockSpec((1, tn_eff), lambda i, j: (0, j))
        o_spec = pl.BlockSpec((tm_eff, tn_eff), lambda i, j: (i, j))
        streamed_bytes = nm * w_bytes + x_bytes
    else:
        grid = (nv, nm)
        x_spec = pl.BlockSpec((tm_eff, D), lambda j, i: (i, 0))
        w_spec = pl.BlockSpec((D, tn_eff), lambda j, i: (0, j))
        b_spec = pl.BlockSpec((1, tn_eff), lambda j, i: (0, j))
        o_spec = pl.BlockSpec((tm_eff, tn_eff), lambda j, i: (i, j))
        streamed_bytes = nv * x_bytes + w_bytes

    # VMEM limit sized to the tile plan, clamped to ~85% of this generation's
    # physical VMEM (no fixed 56 MiB ceiling).
    vmem_bytes = (2 * (tm_eff * D * x_item + D * tn_eff * w_item + tn_eff * b_item)
                  + 2 * tm_eff * tn_eff * o_item
                  + (4 << 20))
    vmem_bytes = int(min(max(vmem_bytes, 16 << 20), int(vmem_cap * 0.85)))

    cost = pl.CostEstimate(
        flops=2 * M * D * V,
        transcendentals=0,
        bytes_accessed=int(streamed_bytes + bias_bytes + out_bytes),
    )

    out2d = pl.pallas_call(
        _linear_kernel,
        out_shape=jax.ShapeDtypeStruct((M, V), out_dtype),
        grid_spec=pltpu.PrefetchScalarGridSpec(
            num_scalar_prefetch=0,
            grid=grid,
            in_specs=[x_spec, w_spec, b_spec],
            out_specs=o_spec,
        ),
        compiler_params=pltpu.CompilerParams(
            dimension_semantics=("parallel", "parallel"),
            vmem_limit_bytes=vmem_bytes,
        ),
        cost_estimate=cost,
    )(x2d, weight, b2d)

    return out2d.reshape(B, S, V)


if __name__ == "__main__":
    # Small shapes consistent with the module's forward.
    batch, seq, input_dim, vocab_size = 2, 8, 32, 256

    key = jax.random.PRNGKey(0)
    k_x, k_w, k_b = jax.random.split(key, 3)

    hidden_states = jax.random.normal(k_x, (batch, seq, input_dim), dtype=jnp.float32)

    # Deterministic parameter init mimicking nn.Linear's uniform(-1/sqrt(D), 1/sqrt(D)).
    bound = 1.0 / jnp.sqrt(jnp.float32(input_dim))
    # PyTorch stores weight as (vocab, input_dim); we keep the transposed (D, V) layout.
    w_torch = jax.random.uniform(k_w, (vocab_size, input_dim), jnp.float32, -bound, bound)
    weight = w_torch.T  # (D, V)
    bias = jax.random.uniform(k_b, (vocab_size,), jnp.float32, -bound, bound)

    out = exab_generation_head(hidden_states, weight, bias)
    out = jax.block_until_ready(out)

    # Reference check against plain JAX.
    ref = hidden_states @ weight + bias
    assert out.shape == (batch, seq, vocab_size)
    assert jnp.allclose(out, ref, atol=1e-5, rtol=1e-5)

    print("KERNEL_OK")
</pallas_src>

<mosaic_0001>
module attributes {stable_mosaic.version = 11 : i64} {
  func.func @_linear_kernel(%arg0: i32, %arg1: i32, %arg2: memref<16x32xf32, #tpu.memory_space<vmem>>, %arg3: memref<32x256xf32, #tpu.memory_space<vmem>>, %arg4: memref<1x256xf32, #tpu.memory_space<vmem>>, %arg5: memref<16x256xf32, #tpu.memory_space<vmem>>) attributes {dimension_semantics = [#tpu.dimension_semantics<parallel>, #tpu.dimension_semantics<parallel>], iteration_bounds = array<i64: 1, 1>, scalar_prefetch = 0 : i64, scratch_operands = 0 : i64, tpu.core_type = #tpu.core_type<tc>, window_params = [{transform_indices = @transform_0, window_bounds = array<i64: 16, 32>}, {transform_indices = @transform_1, window_bounds = array<i64: 32, 256>}, {transform_indices = @transform_2, window_bounds = array<i64: 1, 256>}, {transform_indices = @transform_3, window_bounds = array<i64: 16, 256>}]} {
    %c0 = arith.constant 0 : index
    %c0_0 = arith.constant 0 : index
    %0 = vector.load %arg2[%c0, %c0_0] : memref<16x32xf32, #tpu.memory_space<vmem>>, vector<16x32xf32>
    %c0_1 = arith.constant 0 : index
    %c0_2 = arith.constant 0 : index
    %1 = vector.load %arg3[%c0_1, %c0_2] : memref<32x256xf32, #tpu.memory_space<vmem>>, vector<32x256xf32>
    %cst = arith.constant dense<0.000000e+00> : vector<16x256xf32>
    %2 = tpu.matmul %0, %1, %cst {dimension_numbers = #tpu.dot_dimension_numbers<[1], [0], [0], [1], [0, 0, 1, 1], [], []>} : vector<16x32xf32>, vector<32x256xf32>, vector<16x256xf32> -> vector<16x256xf32>
    %c0_3 = arith.constant 0 : index
    %c0_4 = arith.constant 0 : index
    %3 = vector.load %arg4[%c0_3, %c0_4] : memref<1x256xf32, #tpu.memory_space<vmem>>, vector<1x256xf32>
    %4 = vector.broadcast %3 : vector<1x256xf32> to vector<16x256xf32>
    %5 = arith.addf %2, %4 : vector<16x256xf32>
    %c0_5 = arith.constant 0 : index
    %c0_6 = arith.constant 0 : index
    %6 = vector.load %arg5[%c0_5, %c0_6] : memref<16x256xf32, #tpu.memory_space<vmem>>, vector<16x256xf32>
    tpu.vector_store %arg5[%c0_5, %c0_6], %5 {strides = array<i32>} : memref<16x256xf32, #tpu.memory_space<vmem>>, vector<16x256xf32>,
    return
  }
  func.func @transform_0(%arg0: i32, %arg1: i32) -> (i32, i32) {
    %c0_i32 = arith.constant 0 : i32
    %c0_i32_0 = arith.constant 0 : i32
    return %arg0, %c0_i32 : i32, i32
  }
  func.func @transform_1(%arg0: i32, %arg1: i32) -> (i32, i32) {
    %c0_i32 = arith.constant 0 : i32
    %c0_i32_0 = arith.constant 0 : i32
    return %c0_i32, %arg1 : i32, i32
  }
  func.func @transform_2(%arg0: i32, %arg1: i32) -> (i32, i32) {
    %c0_i32 = arith.constant 0 : i32
    %c0_i32_0 = arith.constant 0 : i32
    return %c0_i32, %arg1 : i32, i32
  }
  func.func @transform_3(%arg0: i32, %arg1: i32) -> (i32, i32) {
    %c0_i32 = arith.constant 0 : i32
    return %arg0, %arg1 : i32, i32
  }
}

</mosaic_0001>

<llo_original>
// kernel: exab_generation_head.1
$region0: #{exab_generation_head.1}
  #allocation0 [shape = 'u32[]', space=smem, size = 0x4, offset = 0x4, fixed_abs, tag = 'smem constant byte address 0x4 - core index']
  #allocation1 [shape = 'u32[144,128]{1,0:T(1,128)}', space=vmem, size = 0x12000, scoped, tag = 'internal scratch']
  %s0 = inlined_call_operand.hbm [shape: f32[16,32], index: 0, kind: input, shape index: {}]
  %s1 = inlined_call_operand.hbm [shape: f32[32,256], index: 1, kind: input, shape index: {}]
  %s2 = inlined_call_operand.vmem [shape: f32[1,256], index: 2, kind: input, shape index: {}]
  %s3 = inlined_call_operand.hbm [shape: f32[16,256], index: 3, kind: output, shape index: {}]
  %s4 = sld [smem:[#allocation0]]
  $region30: #{exab_generation_head.1} parent=0
    _
  %s6 = ssub.s32 1, %s4
  %s7 = scalar_select 0, %s6, %s4
  $region1: #{exab_generation_head.1} parent=0
    #allocation2 [shape = 'u8[8192]{0}', space=vmem, size = 0x2000, scoped, tag = 'input window, operand 0, single buffered']
    #allocation3 [shape = 's32[1]{0}', space=sflag, size = 0x4, scoped, tag = 'scoped memory for exab_generation_head.1']
    #allocation4 [shape = 's32[1]{0}', space=sflag, size = 0x4, scoped, tag = 'scoped memory for exab_generation_head.1']
    #allocation5 [shape = 'u8[32768]{0}', space=vmem, size = 0x8000, scoped, tag = 'input window, operand 1, single buffered']
    #allocation6 [shape = 's32[1]{0}', space=sflag, size = 0x4, scoped, tag = 'scoped memory for exab_generation_head.1']
    #allocation7 [shape = 'u8[16384]{0}', space=vmem, size = 0x4000, scoped, tag = 'output window, operand 0, single buffered']
    %8 = vsyncpa [#allocation3], 0
    %9 = vsyncpa [#allocation6], 0
    %10 = vsyncpa [#allocation4], 0
    // Predicated region
    $region2: #{exab_generation_head.1} parent=1 // pred_check
      _
    $region3: #{exab_generation_head.1} parent=1 // pred_check_branch
      %12 = sbr.rel (0) target = $region5
    $region4: #{exab_generation_head.1} parent=1 // pred_region
      %s14 = ssub.s32 256, 256
      %15 = vsyncadd [#allocation3], %s14
      %s16 = sshll.u32 [#allocation2], 4
      %s17 = int_to_ptr.vmem [resolvable:$true] %s16
      %22 = dma.hbm_to_vmem [thread:$0]  %s0, 256, %s17, [#allocation3], 128, 128, 8
    $region5: #{exab_generation_head.1} parent=1 // pred_fallthru
      _
    // Predicated region
    $region6: #{exab_generation_head.1} parent=1 // pred_check
      _
    $region7: #{exab_generation_head.1} parent=1 // pred_check_branch
      %24 = sbr.rel (0) target = $region9
    $region8: #{exab_generation_head.1} parent=1 // pred_region
      %s26 = ssub.s32 1024, 1024
      %27 = vsyncadd [#allocation6], %s26
      %s28 = sshll.u32 [#allocation5], 4
      %s29 = int_to_ptr.vmem [resolvable:$true] %s28
      %34 = dma.hbm_to_vmem [thread:$0]  %s1, 1024, %s29, [#allocation6], 256, 256, 16
    $region9: #{exab_generation_head.1} parent=1 // pred_fallthru
      _
    // Predicated region
    $region10: #{exab_generation_head.1} parent=1 // pred_check
      _
    $region11: #{exab_generation_head.1} parent=1 // pred_check_branch
      %36 = sbr.rel (0) target = $region13
    $region12: #{exab_generation_head.1} parent=1 // pred_region
      _
    $region13: #{exab_generation_head.1} parent=1 // pred_fallthru
      _
    // Predicated region
    $region14: #{exab_generation_head.1} parent=1 // pred_check
      _
    $region15: #{exab_generation_head.1} parent=1 // pred_check_branch
      %38 = sbr.rel (0) target = $region17
    $region16: #{exab_generation_head.1} parent=1 // pred_region
      %39 = dma.done [#allocation3], 256
    $region17: #{exab_generation_head.1} parent=1 // pred_fallthru
      _
    // Predicated region
    $region18: #{exab_generation_head.1} parent=1 // pred_check
      _
    $region19: #{exab_generation_head.1} parent=1 // pred_check_branch
      %41 = sbr.rel (0) target = $region21
    $region20: #{exab_generation_head.1} parent=1 // pred_region
      %42 = dma.done [#allocation6], 1024
    $region21: #{exab_generation_head.1} parent=1 // pred_fallthru
      _
    %v43 = vld [vmem:[#allocation2] sm:$0xff]
    %v44 = vld [vmem:[#allocation2 + $0x8] sm:$0xff]
    %v45 = vld [vmem:[#allocation5] sm:$0xff]
    %v46 = vld [vmem:[#allocation5 + $0x8] sm:$0xff]
    %v47 = vld [vmem:[#allocation5 + $0x10] sm:$0xff]
    %v48 = vld [vmem:[#allocation5 + $0x18] sm:$0xff]
    %v49 = vld [vmem:[#allocation5 + $0x20] sm:$0xff]
    %v50 = vld [vmem:[#allocation5 + $0x28] sm:$0xff]
    %v51 = vld [vmem:[#allocation5 + $0x30] sm:$0xff]
    %v52 = vld [vmem:[#allocation5 + $0x38] sm:$0xff]
    %v53 = vld [vmem:[%s2] sm:$0x3]
    %v55 = vlaneseq
    %v56 = vshrl.u32 %v55, 7
    %v57 = vsub.s32 0, %v56
    %v58 = vrot.slane %v53, %v57
    %v59 = vlaneseq
    %v60 = vshrl.u32 %v59, 7
    %v61 = vsub.s32 1, %v60
    %v62 = vrot.slane %v53, %v61
    %vm65 = vcmask 261120
    %v67 = vsel %vm65, %v43, 0
    %v70 = vsel %vm65, %v44, 0
    %72 = vmatprep.subr.mxu0 0.0
    %73 = vmatpush1.msra.mxu0 0.0
    %74 = vmatprep.subr.mxu0 0.0
    %75 = vmatpush1.msra.mxu0 0.0
    %76 = vmatprep.subr.mxu0 0.0
    %77 = vmatpush1.msra.mxu0 0.0
    %78 = vmatprep.subr.mxu0 0.0
    %79 = vmatpush1.msra.mxu0 0.0
    %80 = vmatprep.subr.mxu0 0.0
    %81 = vmatpush1.msra.mxu0 0.0
    %82 = vmatprep.subr.mxu0 0.0
    %83 = vmatpush1.msra.mxu0 0.0
    %84 = vmatprep.subr.mxu0 0.0
    %85 = vmatpush1.msra.mxu0 0.0
    %86 = vmatprep.subr.mxu0 0.0
    %87 = vmatpush1.msra.mxu0 0.0
    %88 = vmatprep.subr.mxu0 0.0
    %89 = vmatpush1.msra.mxu0 0.0
    %90 = vmatprep.subr.mxu0 0.0
    %91 = vmatpush1.msra.mxu0 0.0
    %92 = vmatprep.subr.mxu0 0.0
    %93 = vmatpush1.msra.mxu0 0.0
    %94 = vmatprep.subr.mxu0 0.0
    %95 = vmatpush1.msra.mxu0 0.0
    %96 = vmatprep.subr.mxu0 %v52
    %97 = vmatpush1.msra.mxu0 %v51
    %98 = vmatprep.subr.mxu0 %v50
    %99 = vmatpush1.msra.mxu0 %v49
    %100 = vmatprep.subr.mxu0 %v48
    %101 = vmatpush1.msra.mxu0 %v47
    %102 = vmatprep.subr.mxu0 %v46
    %103 = vmatpush1.msra.mxu0 %v45
    %104 = vmatprep.subr.mxu0 0.0
    %105 = vmatpush2.msra.mxu0 0.0
    %106 = vmatprep.subr.mxu0 0.0
    %107 = vmatpush2.msra.mxu0 0.0
    %108 = vmatprep.subr.mxu0 0.0
    %109 = vmatpush2.msra.mxu0 0.0
    %110 = vmatprep.subr.mxu0 0.0
    %111 = vmatpush2.msra.mxu0 0.0
    %112 = vmatprep.subr.mxu0 0.0
    %113 = vmatpush2.msra.mxu0 0.0
    %114 = vmatprep.subr.mxu0 0.0
    %115 = vmatpush2.msra.mxu0 0.0
    %116 = vmatprep.subr.mxu0 0.0
    %117 = vmatpush2.msra.mxu0 0.0
    %118 = vmatprep.subr.mxu0 0.0
    %119 = vmatpush2.msra.mxu0 0.0
    %120 = vmatprep.subr.mxu0 0.0
    %121 = vmatpush2.msra.mxu0 0.0
    %122 = vmatprep.subr.mxu0 0.0
    %123 = vmatpush2.msra.mxu0 0.0
    %124 = vmatprep.subr.mxu0 0.0
    %125 = vmatpush2.msra.mxu0 0.0
    %126 = vmatprep.subr.mxu0 0.0
    %127 = vmatpush2.msra.mxu0 0.0
    %128 = vmatprep.subr.mxu0 0.0
    %129 = vmatpush2.msra.mxu0 0.0
    %130 = vmatprep.subr.mxu0 0.0
    %131 = vmatpush2.msra.mxu0 0.0
    %132 = vmatprep.subr.mxu0 0.0
    %133 = vmatpush2.msra.mxu0 0.0
    %134 = vmatprep.subr.mxu0 0.0
    %135 = vmatpush2.msra.mxu0 0.0
    %136 = vmatprep.mubr.f32.mxu0 0.0
    %137 = vmatmul.mubr.f32.gmra.mxu0 %v67
    %v138 = vpop.f32.mrf.mxu0
    %v139 = vadd.f32 %v58, %v138
    %v140 = vpop.f32.mrf.mxu0
    %v141 = vadd.f32 %v62, %v140
    %142 = vmatprep.mubr.f32.mxu0 0.0
    %143 = vmatmul.mubr.f32.gmra.mxu0 %v70
    %v144 = vpop.f32.mrf.mxu0
    %v145 = vadd.f32 %v58, %v144
    %v146 = vpop.f32.mrf.mxu0
    %v147 = vadd.f32 %v62, %v146
    %148 = vdwg.mxu0
    %149 = vst [vmem:[#allocation7] sm:$0xff] %v139
    %150 = vst [vmem:[#allocation7 + $0x8] sm:$0xff] %v141
    %151 = vst [vmem:[#allocation7 + $0x10] sm:$0xff] %v145
    %152 = vst [vmem:[#allocation7 + $0x18] sm:$0xff] %v147
    // Predicated region
    $region22: #{exab_generation_head.1} parent=1 // pred_check
      _
    $region23: #{exab_generation_head.1} parent=1 // pred_check_branch
      %154 = sbr.rel (0) target = $region25
    $region24: #{exab_generation_head.1} parent=1 // pred_region
      %s156 = ssub.s32 512, 512
      %157 = vsyncadd [#allocation4], %s156
      %s158 = sshll.u32 [#allocation7], 4
      %s159 = int_to_ptr.vmem [resolvable:$true] %s158
      %164 = dma.vmem_to_hbm [thread:$0]  %s159, 512, %s3, [#allocation4], 256, 256, 16
    $region25: #{exab_generation_head.1} parent=1 // pred_fallthru
      _
    // Predicated region
    $region26: #{exab_generation_head.1} parent=1 // pred_check
      _
    $region27: #{exab_generation_head.1} parent=1 // pred_check_branch
      %166 = sbr.rel (0) target = $region29
    $region28: #{exab_generation_head.1} parent=1 // pred_region
      %167 = dma.done [#allocation4], 512
    $region29: #{exab_generation_head.1} parent=1 // pred_fallthru
      _
    %168 = vsyncpa [#allocation3], 1
    %169 = vsyncpa [#allocation6], 1
    %170 = vsyncpa [#allocation4], 1

</llo_original>
